<compile_context>
chip_gen: v5e
topology: v5e:2x2
jax: 0.10.0
libtpu: 0.0.40
codegen_flags: <defaults>
</compile_context>

<pallas_src>
import jax
import jax.numpy as jnp
from jax.experimental import pallas as pl
from jax.experimental.pallas import tpu as pltpu

K = 5          # conv kernel size
PAD = 2        # conv padding
GROUPS = 2     # grouped conv
C_OUT = 6      # conv output channels

BLOCK_BYTES = 8 * 1024 * 1024   # ~8 MiB input block -> ~16 MiB double-buffered
ROW_CHUNK = 256                 # rows per in-kernel accumulation chunk
VMEM_LIMIT_BYTES = 32 * 1024 * 1024  # >= scoped defaults, <= physical on v5e/v6e/v7x


# ----------------------------- Pallas kernel --------------------------------

def _classifier_kernel(x_ref, w_ref, b_ref, o_ref):
    # x_ref: [TB, D] VMEM   w_ref: [1, D] VMEM   b_ref: [1, 1] SMEM   o_ref: [TB, 1]
    tb = x_ref.shape[0]
    w = w_ref[...].astype(jnp.float32)          # [1, D], broadcast over rows
    bias = b_ref[0, 0]
    if tb <= ROW_CHUNK:
        # Small tile: single fused multiply-reduce (this is the N=2 path).
        o_ref[...] = jnp.sum(x_ref[...].astype(jnp.float32) * w,
                             axis=-1, keepdims=True) + bias
    else:
        # Large tile: chunk the reduce so the fused product temp stays at
        # <= ROW_CHUNK x D f32 (~1 MiB) instead of a multi-MiB [TB, D] temp.
        # Static Python loop == fully unrolled fori_loop (trip count <= ~8).
        for start in range(0, tb, ROW_CHUNK):
            rows = min(ROW_CHUNK, tb - start)
            xc = x_ref[start:start + rows, :].astype(jnp.float32)
            o_ref[start:start + rows, :] = (
                jnp.sum(xc * w, axis=-1, keepdims=True) + bias)


# -------------------- parameter folding (once per param set) ----------------

def _expand_grouped_weight(w_conv, c_in):
    """[C_out, C_in/groups, K, K] -> dense [C_out, C_in, K, K] (zeros off-group)."""
    cin_g = c_in // GROUPS
    cout_g = C_OUT // GROUPS
    w_dense = jnp.zeros((C_OUT, c_in, K, K), w_conv.dtype)
    for g in range(GROUPS):
        w_dense = w_dense.at[g * cout_g:(g + 1) * cout_g,
                             g * cin_g:(g + 1) * cin_g].set(
            w_conv[g * cout_g:(g + 1) * cout_g])
    return w_dense


def fold_classifier_params(w_conv, b_conv, w_fc, b_fc, c_in, h, w):
    """Fold fc back through the conv.  Data independent; call ONCE per parameter
    set (hoisted out of the per-batch path).  Returns (w_eff_flat [1, C_in*H*W],
    b_eff [1,1])."""
    w_dense = _expand_grouped_weight(w_conv, c_in)        # [C_out, C_in, K, K]
    w_fc3 = w_fc.reshape(C_OUT, h, w)                     # torch.flatten order (c, h, w)

    # w_eff[ci,h',w'] = sum_{co,kh,kw} w_dense[co,ci,kh,kw] * w_fc3[co, h'-kh+PAD, w'-kw+PAD]
    # with zero outside [0,H)x[0,W).  Pad w_fc3 so every shifted window is a static slice.
    pad_lo = K - 1 - PAD
    pad_hi = PAD
    wfc_pad = jnp.pad(w_fc3, ((0, 0), (pad_lo, pad_hi), (pad_lo, pad_hi)))
    w_eff = jnp.zeros((c_in, h, w), jnp.float32)
    for kh in range(K):
        for kw in range(K):
            sl = wfc_pad[:, K - 1 - kh:K - 1 - kh + h, K - 1 - kw:K - 1 - kw + w]
            w_eff = w_eff + jnp.einsum('oi,ohw->ihw', w_dense[:, :, kh, kw], sl,
                                       precision=jax.lax.Precision.HIGHEST)

    b_eff = b_fc.reshape(()) + jnp.sum(w_fc3.sum(axis=(1, 2)) * b_conv)
    w_eff_flat = w_eff.reshape(1, c_in * h * w)
    return w_eff_flat, b_eff.reshape(1, 1).astype(jnp.float32)


# ------------------------------- apply path ---------------------------------

def _pick_batch_tile(d, itemsize):
    """Rows per grid step from an ~8 MiB VMEM byte budget (not a fixed 256)."""
    rows = max(8, BLOCK_BYTES // (d * itemsize))
    if rows >= ROW_CHUNK:
        rows = (rows // ROW_CHUNK) * ROW_CHUNK   # keep in-kernel chunks aligned
    else:
        rows = max(8, (rows // 8) * 8)
    return rows


@jax.jit
def classifier_apply(x, w_eff_flat, b_eff):
    """x: [N, C_in, H, W] (f32 or bf16, NCHW as in PyTorch). Returns [N, 1] f32."""
    n = x.shape[0]
    d = x.shape[1] * x.shape[2] * x.shape[3]
    x_flat = x.reshape(n, d)                    # free reshape, lane-dense last dim

    budget_rows = _pick_batch_tile(d, x_flat.dtype.itemsize)
    if n <= budget_rows:
        tb = n                                  # single block, zero padding
        n_rows = n
    else:
        tb = budget_rows
        n_rows = ((n + 7) // 8) * 8             # pad to sublane multiple only;
        if n_rows != n:                         # ragged last grid block is
            x_flat = jnp.pad(x_flat, ((0, n_rows - n), (0, 0)))  # clamp-DMA'd

    out = pl.pallas_call(
        _classifier_kernel,
        out_shape=jax.ShapeDtypeStruct((n_rows, 1), jnp.float32),
        grid_spec=pltpu.PrefetchScalarGridSpec(
            num_scalar_prefetch=0,
            grid=(pl.cdiv(n_rows, tb),),
            in_specs=[
                pl.BlockSpec((tb, d), lambda i: (i, 0)),                # input tile
                pl.BlockSpec((1, d), lambda i: (0, 0)),                 # folded weight
                pl.BlockSpec(memory_space=pltpu.MemorySpace.SMEM),      # folded bias
            ],
            out_specs=pl.BlockSpec((tb, 1), lambda i: (i, 0)),          # per-tile write
        ),
        compiler_params=pltpu.CompilerParams(
            # TODO(synk): verify on v7x xprof that the batch axis shards across
            # both TensorCores; if not, switch to pltpu.CORE_PARALLEL / core_map.
            dimension_semantics=("parallel",),
            vmem_limit_bytes=VMEM_LIMIT_BYTES),
    )(x_flat, w_eff_flat, b_eff)

    return out[:n]


def classifier_forward(x, w_conv, b_conv, w_fc, b_fc):
    """Convenience wrapper: fold + apply.  Prefer folding once with
    fold_classifier_params and calling classifier_apply per batch."""
    n, c_in, h, w = x.shape
    w_eff_flat, b_eff = fold_classifier_params(w_conv, b_conv, w_fc, b_fc, c_in, h, w)
    return classifier_apply(x, w_eff_flat, b_eff)


# ------------------------------- reference ----------------------------------

def _reference_forward(x, w_conv, b_conv, w_fc, b_fc):
    """Pure-JAX reference matching PyTorch semantics (layer2 treated as identity)."""
    # TODO(synk): `self.layer2` is never defined in the PyTorch __init__ (reference
    # forward would raise AttributeError); treated as identity here and in the kernel.
    y = jax.lax.conv_general_dilated(
        x, w_conv, window_strides=(1, 1),
        padding=((PAD, PAD), (PAD, PAD)),
        dimension_numbers=("NCHW", "OIHW", "NCHW"),
        feature_group_count=GROUPS)
    y = y + b_conv[None, :, None, None]
    flat = y.reshape(y.shape[0], -1)                      # torch.flatten(x, 1)
    return flat @ w_fc.T + b_fc


if __name__ == "__main__":
    N, C_IN, IN_SIZE = 2, 4, 16

    key = jax.random.PRNGKey(0)
    kx, kw1, kb1, kw2, kb2 = jax.random.split(key, 5)

    x = jax.random.normal(kx, (N, C_IN, IN_SIZE, IN_SIZE), jnp.float32)
    # nn.Conv2d(in_ch, 6, 5, 1, 2, groups=2) weight: [6, in_ch//2, 5, 5]
    w_conv = 0.1 * jax.random.normal(kw1, (C_OUT, C_IN // GROUPS, K, K), jnp.float32)
    b_conv = 0.1 * jax.random.normal(kb1, (C_OUT,), jnp.float32)
    # nn.Linear(6*in_size*in_size, 1): weight [1, 6*H*W], bias [1]
    w_fc = 0.05 * jax.random.normal(kw2, (1, C_OUT * IN_SIZE * IN_SIZE), jnp.float32)
    b_fc = 0.1 * jax.random.normal(kb2, (1,), jnp.float32)

    # Fold once per parameter set (hoisted out of the per-call path).
    w_eff_flat, b_eff = fold_classifier_params(w_conv, b_conv, w_fc, b_fc,
                                               C_IN, IN_SIZE, IN_SIZE)

    out = classifier_apply(x, w_eff_flat, b_eff)
    out = jax.block_until_ready(out)

    ref = _reference_forward(x, w_conv, b_conv, w_fc, b_fc)
    assert out.shape == (N, 1), out.shape
    assert jnp.allclose(out, ref, rtol=1e-2, atol=1e-2), (out, ref)

    print("KERNEL_OK")
</pallas_src>

<mosaic_0001>
module attributes {stable_mosaic.version = 11 : i64} {
  func.func @_classifier_kernel(%arg0: i32, %arg1: memref<2x1024xf32, #tpu.memory_space<vmem>>, %arg2: memref<1x1024xf32, #tpu.memory_space<vmem>>, %arg3: memref<1x1xf32, #tpu.memory_space<smem>>, %arg4: memref<2x1xf32, #tpu.memory_space<vmem>>) attributes {dimension_semantics = [#tpu.dimension_semantics<parallel>], iteration_bounds = array<i64: 1>, scalar_prefetch = 0 : i64, scratch_operands = 0 : i64, tpu.core_type = #tpu.core_type<tc>, window_params = [{transform_indices = @transform_0, window_bounds = array<i64: 2, 1024>}, {pipeline_mode = #tpu.pipeline_mode<synchronous>, transform_indices = @transform_1, window_bounds = array<i64: 1, 1024>}, {transform_indices = @transform_2, window_bounds = array<i64: 1, 1>}, {transform_indices = @transform_3, window_bounds = array<i64: 2, 1>}]} {
    %c0 = arith.constant 0 : index
    %c0_0 = arith.constant 0 : index
    %0 = vector.load %arg2[%c0, %c0_0] : memref<1x1024xf32, #tpu.memory_space<vmem>>, vector<1x1024xf32>
    %c0_1 = arith.constant 0 : index
    %c0_2 = arith.constant 0 : index
    %1 = memref.load %arg3[%c0_1, %c0_2] : memref<1x1xf32, #tpu.memory_space<smem>>
    %c0_3 = arith.constant 0 : index
    %c0_4 = arith.constant 0 : index
    %2 = vector.load %arg1[%c0_3, %c0_4] : memref<2x1024xf32, #tpu.memory_space<vmem>>, vector<2x1024xf32>
    %3 = vector.broadcast %0 : vector<1x1024xf32> to vector<2x1024xf32>
    %4 = arith.mulf %2, %3 : vector<2x1024xf32>
    %cst = arith.constant dense<0.000000e+00> : vector<2xf32>
    %5 = vector.multi_reduction <add>, %4, %cst [1] : vector<2x1024xf32> to vector<2xf32>
    %6 = vector.shape_cast %5 : vector<2xf32> to vector<2x1xf32>
    %7 = vector.broadcast %1 : f32 to vector<2x1xf32>
    %8 = arith.addf %6, %7 : vector<2x1xf32>
    %c0_5 = arith.constant 0 : index
    %c0_6 = arith.constant 0 : index
    %9 = vector.load %arg4[%c0_5, %c0_6] : memref<2x1xf32, #tpu.memory_space<vmem>>, vector<2x1xf32>
    tpu.vector_store %arg4[%c0_5, %c0_6], %8 {strides = array<i32>} : memref<2x1xf32, #tpu.memory_space<vmem>>, vector<2x1xf32>,
    return
  }
  func.func @transform_0(%arg0: i32) -> (i32, i32) {
    %c0_i32 = arith.constant 0 : i32
    %c0_i32_0 = arith.constant 0 : i32
    return %arg0, %c0_i32 : i32, i32
  }
  func.func @transform_1(%arg0: i32) -> (i32, i32) {
    %c0_i32 = arith.constant 0 : i32
    %c0_i32_0 = arith.constant 0 : i32
    %c0_i32_1 = arith.constant 0 : i32
    return %c0_i32, %c0_i32_0 : i32, i32
  }
  func.func @transform_2(%arg0: i32) -> (i32, i32) {
    %c0_i32 = arith.constant 0 : i32
    %c0_i32_0 = arith.constant 0 : i32
    %c0_i32_1 = arith.constant 0 : i32
    return %c0_i32, %c0_i32_0 : i32, i32
  }
  func.func @transform_3(%arg0: i32) -> (i32, i32) {
    %c0_i32 = arith.constant 0 : i32
    %c0_i32_0 = arith.constant 0 : i32
    return %arg0, %c0_i32 : i32, i32
  }
}

</mosaic_0001>

<llo_original>
// kernel: classifier_apply.1
$region0: #{classifier_apply.1}
  #allocation0 [shape = 'u32[]', space=smem, size = 0x4, offset = 0x4, fixed_abs, tag = 'smem constant byte address 0x4 - core index']
  #allocation1 [shape = 'u32[72,128]{1,0:T(1,128)}', space=vmem, size = 0x9000, scoped, tag = 'internal scratch']
  #allocation2 [shape = 'f32[1,1]{1,0:T(1,128)S(6)}', space=smem, size = 0x200, scoped, tag = 'scoped memory for classifier_apply.1']
  %s0 = inlined_call_operand.vmem [shape: f32[2,1024], index: 0, kind: input, shape index: {}]
  %s1 = inlined_call_operand.vmem [shape: f32[1,1024], index: 1, kind: input, shape index: {}]
  %s2 = inlined_call_operand.<no memory space> [shape: f32[1,1], index: 2, kind: input, shape index: {}]
  %s3 = inlined_call_operand.vmem [shape: f32[2,1], index: 3, kind: output, shape index: {}]
  %s4 = sld [smem:[#allocation0]]
  $region22: #{classifier_apply.1} parent=0
    _
  %s6 = ssub.s32 1, %s4
  %s7 = scalar_select 0, %s6, %s4
  %8 = sst [smem:[#allocation2]] %s2
  // Predicated region
  $region2: #{classifier_apply.1} parent=0 // pred_check
    _
  $region3: #{classifier_apply.1} parent=0 // pred_check_branch
    %10 = sbr.rel (0) target = $region5
  $region4: #{classifier_apply.1} parent=0 // pred_region
    _
  $region5: #{classifier_apply.1} parent=0 // pred_fallthru
    _
  // Predicated region
  $region6: #{classifier_apply.1} parent=0 // pred_check
    _
  $region7: #{classifier_apply.1} parent=0 // pred_check_branch
    %12 = sbr.rel (0) target = $region9
  $region8: #{classifier_apply.1} parent=0 // pred_region
    _
  $region9: #{classifier_apply.1} parent=0 // pred_fallthru
    _
  // Predicated region
  $region10: #{classifier_apply.1} parent=0 // pred_check
    _
  $region11: #{classifier_apply.1} parent=0 // pred_check_branch
    %14 = sbr.rel (0) target = $region13
  $region12: #{classifier_apply.1} parent=0 // pred_region
    _
  $region13: #{classifier_apply.1} parent=0 // pred_fallthru
    _
  %v15 = vld [vmem:[%s1] sm:$0xff]
  %s16 = sld [smem:[#allocation2]]
  %v17 = vld [vmem:[%s0] sm:$0xff]
  %v18 = vld [vmem:[%s0 + $0x8] sm:$0xff]
  %v20 = vperm.slane %v15, 0
  %v21 = vperm.slane %v15, 1
  %v22 = vperm.slane %v15, 2
  %v23 = vperm.slane %v15, 3
  %v24 = vperm.slane %v15, 4
  %v25 = vperm.slane %v15, 5
  %v26 = vperm.slane %v15, 6
  %v27 = vperm.slane %v15, 7
  %v28 = vrot.slane %v21, 6
  %v29 = vrot.slane %v22, 4
  %v30 = vrot.slane %v23, 2
  %v31 = vrot.slane %v25, 6
  %v32 = vrot.slane %v26, 4
  %v33 = vrot.slane %v27, 2
  %vm34 = vcmask 1041408
  %v35 = vsel %vm34, %v20, %v28
  %vm36 = vcmask 1045508
  %v37 = vsel %vm36, %v29, %v30
  %vm38 = vcmask 1043456
  %v39 = vsel %vm38, %v35, %v37
  %v40 = vsel %vm34, %v24, %v31
  %v41 = vsel %vm36, %v32, %v33
  %v42 = vsel %vm38, %v40, %v41
  %v45 = vmul.f32 %v17, %v39
  %v46 = vmul.f32 %v18, %v42
  %49 = vst [vmem:[#allocation1] ss:$4 sm:$0xff] %v45
  %s50 = scalar_lea.vmem [#allocation1], 32
  %51 = vst [vmem:[%s50] ss:$4 sm:$0xff] %v46
  %v52 = vld.sshfl [vmem:[#allocation1] sm:$0xff pattern:$0x73625140]
  %v53 = vld.sshfl [vmem:[#allocation1 + $0x8] sm:$0xff pattern:$0x73625140]
  %v54 = vld.sshfl [vmem:[#allocation1 + $0x10] sm:$0xff pattern:$0x73625140]
  %v55 = vld.sshfl [vmem:[#allocation1 + $0x18] sm:$0xff pattern:$0x73625140]
  %v56 = vld.sshfl [vmem:[#allocation1 + $0x20] sm:$0xff pattern:$0x73625140]
  %v57 = vld.sshfl [vmem:[#allocation1 + $0x28] sm:$0xff pattern:$0x73625140]
  %v58 = vld.sshfl [vmem:[#allocation1 + $0x30] sm:$0xff pattern:$0x73625140]
  %v59 = vld.sshfl [vmem:[#allocation1 + $0x38] sm:$0xff pattern:$0x73625140]
  %v68 = vsel %vm34, %v52, 0.0
  %v69 = vsel %vm34, %v53, 0.0
  %v70 = vadd.f32 %v68, %v69
  %v71 = vsel %vm34, %v54, 0.0
  %v72 = vadd.f32 %v70, %v71
  %v73 = vsel %vm34, %v55, 0.0
  %v74 = vadd.f32 %v72, %v73
  %v75 = vsel %vm34, %v56, 0.0
  %v76 = vadd.f32 %v74, %v75
  %v77 = vsel %vm34, %v57, 0.0
  %v78 = vadd.f32 %v76, %v77
  %v79 = vsel %vm34, %v58, 0.0
  %v80 = vadd.f32 %v78, %v79
  %v81 = vsel %vm34, %v59, 0.0
  %v82 = vadd.f32 %v80, %v81
  %83 = vadd.xlane.f32.xlu0 %v82
  %v84 = vpop.xlane.xlu0 %83
  %v85 = vstv %s16
  %v86 = vadd.f32 %v84, %v85
  %vm87 = vcmask 1024
  %88 = vst.msk [vmem:[%s3] sm:$0x3] %vm87, %v86
  // Predicated region
  $region14: #{classifier_apply.1} parent=0 // pred_check
    _
  $region15: #{classifier_apply.1} parent=0 // pred_check_branch
    %90 = sbr.rel (0) target = $region17
  $region16: #{classifier_apply.1} parent=0 // pred_region
    _
  $region17: #{classifier_apply.1} parent=0 // pred_fallthru
    _
  // Predicated region
  $region18: #{classifier_apply.1} parent=0 // pred_check
    _
  $region19: #{classifier_apply.1} parent=0 // pred_check_branch
    %92 = sbr.rel (0) target = $region21
  $region20: #{classifier_apply.1} parent=0 // pred_region
    _
  $region21: #{classifier_apply.1} parent=0 // pred_fallthru
    _

</llo_original>
